<compile_context>
chip_gen: v6e
topology: v6e:2x2x1
jax: 0.10.0
libtpu: 0.0.40
codegen_flags: <defaults>
</compile_context>

<pallas_src>
import jax
import jax.numpy as jnp
from jax.experimental import pallas as pl
from jax.experimental.pallas import tpu as pltpu


def _ceil_div(a, b):
    return -(-a // b)


def _round_up(a, b):
    return _ceil_div(a, b) * b


def _score_body(hid_ref, emb_ref, mask_ref, wh_ref, wi_ref, b_ref, ws_ref, out_ref):
    Lp, tb = out_ref.shape            # score slots, batch-tile rows
    H = wh_ref.shape[0]

    # In-kernel bf16 cast (VPU pack hides under the MXU); weights arrive bf16.
    emb = emb_ref[...].astype(jnp.bfloat16)          # (tb*Lp, I)
    hid = hid_ref[...].astype(jnp.bfloat16)          # (tb, H)

    # (tb*Lp, I) @ (I, H) -> f32 : one big MXU pass per grid step.
    he = jnp.dot(emb, wi_ref[...], preferred_element_type=jnp.float32)
    # (tb, H) @ (H, H) + bias -> f32 (broadcast over Lp below).
    hh = jnp.dot(hid, wh_ref[...], preferred_element_type=jnp.float32)
    hh = hh + b_ref[...]                             # (tb, H) + (1, H)

    # Lp is a multiple of 8 (or the full dim), so this reshape stays tile
    # aligned (no per-step VMEM relayout).
    h = he.reshape(tb, Lp, H) + hh[:, None, :]       # (tb, Lp, H) f32
    h = jnp.maximum(h, 0.0)                          # ReLU

    # score = energy @ w_score^T, done as a VPU mul + lane reduce instead of a
    # lane-sparse (rows, H) @ (H, 1) MXU pass.
    s = jnp.sum(h * ws_ref[...][None], axis=-1)      # (tb, Lp) f32

    if mask_ref is not None:
        s = jnp.where(mask_ref[...] != 0, jnp.float32(-1e12), s)

    # Lane-dense store: (Lp, tb) slab with tb (multiple of 128 when blocking)
    # in the lane dimension instead of tb masked 8-lane stores.
    out_ref[...] = s.T


def _kernel_with_mask(hid_ref, emb_ref, mask_ref, wh_ref, wi_ref, b_ref, ws_ref, out_ref):
    _score_body(hid_ref, emb_ref, mask_ref, wh_ref, wi_ref, b_ref, ws_ref, out_ref)


def _kernel_no_mask(hid_ref, emb_ref, wh_ref, wi_ref, b_ref, ws_ref, out_ref):
    _score_body(hid_ref, emb_ref, None, wh_ref, wi_ref, b_ref, ws_ref, out_ref)


def score_forward(hidden, num_embeddings, wh, wi, b_attn, w_score,
                  num_mask=None, *, block_b=None):
    """hidden: (B,1,H), num_embeddings: (B,L,I), num_mask: (B,L) bool/int or None.

    wh = W_attn[:, :H].T (H,H), wi = W_attn[:, H:].T (I,H),
    b_attn: (H,), w_score: (1,H).  Returns (B, L) float32 scores.
    """
    B, _, H = hidden.shape
    _, L, I = num_embeddings.shape

    # Keep the in-kernel 2D->3D reshape tile-aligned: pad L up to a multiple of
    # 8 only if required (padded slots are sliced off the output).
    Lp = _round_up(L, 8)
    if Lp != L:
        num_embeddings = jnp.pad(num_embeddings, ((0, 0), (0, Lp - L), (0, 0)))
        if num_mask is not None:
            num_mask = jnp.pad(num_mask.astype(jnp.int32),
                               ((0, 0), (0, Lp - L)), constant_values=1)

    # Free reshapes only -- no cast / pad passes over the big arrays in HBM.
    hid2 = hidden.reshape(B, H)                    # f32, cast in-kernel
    emb2 = num_embeddings.reshape(B * Lp, I)       # f32, cast in-kernel

    wh_b = wh.astype(jnp.bfloat16)                 # tiny, one-time
    wi_b = wi.astype(jnp.bfloat16)
    b2 = b_attn.reshape(1, H).astype(jnp.float32)
    ws2 = w_score.reshape(1, H).astype(jnp.float32)

    # --- block_b from a VMEM budget ------------------------------------------
    # Per batch-row bytes per pipeline stage:
    #   2x double-buffered input/output blocks (f32 emb, f32 hid, i32 mask, f32 out)
    #   + f32 he/h intermediates + bf16 casted copies of emb/hid.
    per_row = (8 * (Lp * I + H + 2 * Lp)
               + 8 * Lp * H
               + 2 * (Lp * I + H))
    BLOCK_BUDGET = 16 * 1024 * 1024

    if block_b is None:
        cand = max(8, BLOCK_BUDGET // per_row)
        if B >= 256:
            # >=2 grid steps so the "parallel" axis can shard across v7x's 2 TCs.
            cand = min(cand, _round_up(_ceil_div(B, 2), 128))
        if cand >= B:
            block_b = B
        else:
            block_b = max(128, (cand // 128) * 128)   # lane-dense transposed store
    else:
        block_b = min(block_b, B)
        if block_b < B:
            block_b = max(128, (block_b // 128) * 128)
    n_blocks = pl.cdiv(B, block_b)

    weights_bytes = 2 * 2 * (H * H + I * H) + 4 * 4 * H
    est_bytes = per_row * block_b + weights_bytes + (1 << 20)
    vmem_limit = int(min(max(32 * 1024 * 1024, est_bytes * 5 // 4),
                         56 * 1024 * 1024))
    # --------------------------------------------------------------------------

    in_specs = [
        pl.BlockSpec((block_b, H), lambda bi: (bi, 0)),         # hidden rows
        pl.BlockSpec((block_b * Lp, I), lambda bi: (bi, 0)),    # flattened emb
    ]
    args = [hid2, emb2]

    if num_mask is not None:
        mask = num_mask.reshape(B, Lp).astype(jnp.int32)
        in_specs.append(pl.BlockSpec((block_b, Lp), lambda bi: (bi, 0)))
        args.append(mask)
        kernel = _kernel_with_mask
    else:
        kernel = _kernel_no_mask

    in_specs += [
        pl.BlockSpec((H, H), lambda bi: (0, 0)),                # Wh (resident)
        pl.BlockSpec((I, H), lambda bi: (0, 0)),                # Wi (resident)
        pl.BlockSpec((1, H), lambda bi: (0, 0)),                # bias row
        pl.BlockSpec((1, H), lambda bi: (0, 0)),                # w_score row
    ]
    args += [wh_b, wi_b, b2, ws2]

    out_t = pl.pallas_call(
        kernel,
        out_shape=jax.ShapeDtypeStruct((Lp, B), jnp.float32),
        grid_spec=pltpu.PrefetchScalarGridSpec(
            num_scalar_prefetch=0,
            grid=(n_blocks,),
            in_specs=in_specs,
            out_specs=pl.BlockSpec((Lp, block_b), lambda bi: (0, bi)),
        ),
        compiler_params=pltpu.CompilerParams(
            dimension_semantics=("parallel",),
            vmem_limit_bytes=vmem_limit),
    )(*args)

    return out_t.T[:, :L]


if __name__ == "__main__":
    # TODO(synk): encoder/decoder sub-modules and the host-side autoregressive
    # loop (num_stack popping, teacher forcing, argmax feedback) stay outside
    # the kernel; only the Score attention (per-step heavy compute) is here.
    B, L = 2, 8            # batch, score slots (stuff_size + num_size)
    H = 32                 # hidden_size; Seq2Seq uses Score(hidden, hidden)
    I = 32                 # input_size == hidden_size in the module

    key = jax.random.PRNGKey(0)
    k1, k2, k3, k4, k5, k6 = jax.random.split(key, 6)

    hidden = jax.random.normal(k1, (B, 1, H), jnp.float32)
    num_embeddings = jax.random.normal(k2, (B, L, I), jnp.float32)
    num_mask = jax.random.bernoulli(k3, 0.25, (B, L))               # bool mask

    # Parameters (same shapes as nn.Linear in the module).
    W_attn = jax.random.normal(k4, (H, H + I), jnp.float32) * 0.1   # attn.weight
    b_attn = jax.random.normal(k5, (H,), jnp.float32) * 0.1         # attn.bias
    w_score = jax.random.normal(k6, (1, H), jnp.float32) * 0.1      # score.weight (bias=False)

    # Column-split / transpose so concat(hidden, emb) @ W^T == hid@Wh + emb@Wi.
    wh = W_attn[:, :H].T            # (H, H)
    wi = W_attn[:, H:].T            # (I, H)

    out = score_forward(hidden, num_embeddings, wh, wi, b_attn, w_score, num_mask)
    out_nomask = score_forward(hidden, num_embeddings, wh, wi, b_attn, w_score, None)
    out = jax.block_until_ready(out)
    out_nomask = jax.block_until_ready(out_nomask)

    # Reference using the same bf16 rounding of the MXU inputs (f32 accumulate).
    hid_q = hidden.astype(jnp.bfloat16).astype(jnp.float32)
    emb_q = num_embeddings.astype(jnp.bfloat16).astype(jnp.float32)
    wh_q = wh.astype(jnp.bfloat16).astype(jnp.float32)
    wi_q = wi.astype(jnp.bfloat16).astype(jnp.float32)
    energy = jnp.maximum(
        jnp.broadcast_to(hid_q, (B, L, H)).reshape(-1, H) @ wh_q
        + emb_q.reshape(-1, I) @ wi_q + b_attn, 0.0)
    ref_nomask = (energy * w_score.reshape(1, H)).sum(-1).reshape(B, L)
    ref = jnp.where(num_mask, jnp.float32(-1e12), ref_nomask)

    # Full-f32 reference mirroring the PyTorch forward exactly (looser tol
    # because the kernel feeds bf16 to the MXU).
    energy_in = jnp.concatenate(
        [jnp.broadcast_to(hidden, (B, L, H)), num_embeddings], axis=2
    ).reshape(-1, H + I)
    ref_f32 = (jnp.maximum(energy_in @ W_attn.T + b_attn, 0.0) @ w_score.T).reshape(B, L)
    ref_f32 = jnp.where(num_mask, jnp.float32(-1e12), ref_f32)

    assert out.shape == (B, L) and out_nomask.shape == (B, L)
    assert jnp.allclose(out, ref, atol=1e-3, rtol=1e-3), (out, ref)
    assert jnp.allclose(out_nomask, ref_nomask, atol=1e-3, rtol=1e-3)
    assert jnp.allclose(out, ref_f32, atol=5e-2, rtol=5e-2), (out, ref_f32)
    print("KERNEL_OK")
</pallas_src>

<mosaic_0001>
module attributes {stable_mosaic.version = 11 : i64} {
  func.func @_kernel_with_mask(%arg0: i32, %arg1: memref<2x32xf32, #tpu.memory_space<vmem>>, %arg2: memref<16x32xf32, #tpu.memory_space<vmem>>, %arg3: memref<2x8xi32, #tpu.memory_space<vmem>>, %arg4: memref<32x32xbf16, #tpu.memory_space<vmem>>, %arg5: memref<32x32xbf16, #tpu.memory_space<vmem>>, %arg6: memref<1x32xf32, #tpu.memory_space<vmem>>, %arg7: memref<1x32xf32, #tpu.memory_space<vmem>>, %arg8: memref<8x2xf32, #tpu.memory_space<vmem>>) attributes {dimension_semantics = [#tpu.dimension_semantics<parallel>], iteration_bounds = array<i64: 1>, scalar_prefetch = 0 : i64, scratch_operands = 0 : i64, tpu.core_type = #tpu.core_type<tc>, window_params = [{transform_indices = @transform_0, window_bounds = array<i64: 2, 32>}, {transform_indices = @transform_1, window_bounds = array<i64: 16, 32>}, {transform_indices = @transform_2, window_bounds = array<i64: 2, 8>}, {pipeline_mode = #tpu.pipeline_mode<synchronous>, transform_indices = @transform_3, window_bounds = array<i64: 32, 32>}, {pipeline_mode = #tpu.pipeline_mode<synchronous>, transform_indices = @transform_4, window_bounds = array<i64: 32, 32>}, {pipeline_mode = #tpu.pipeline_mode<synchronous>, transform_indices = @transform_5, window_bounds = array<i64: 1, 32>}, {pipeline_mode = #tpu.pipeline_mode<synchronous>, transform_indices = @transform_6, window_bounds = array<i64: 1, 32>}, {transform_indices = @transform_7, window_bounds = array<i64: 8, 2>}]} {
    %c0 = arith.constant 0 : index
    %c0_0 = arith.constant 0 : index
    %0 = vector.load %arg2[%c0, %c0_0] : memref<16x32xf32, #tpu.memory_space<vmem>>, vector<16x32xf32>
    %1 = arith.truncf %0 : vector<16x32xf32> to vector<16x32xbf16>
    %c0_1 = arith.constant 0 : index
    %c0_2 = arith.constant 0 : index
    %2 = vector.load %arg1[%c0_1, %c0_2] : memref<2x32xf32, #tpu.memory_space<vmem>>, vector<2x32xf32>
    %3 = arith.truncf %2 : vector<2x32xf32> to vector<2x32xbf16>
    %c0_3 = arith.constant 0 : index
    %c0_4 = arith.constant 0 : index
    %4 = vector.load %arg5[%c0_3, %c0_4] : memref<32x32xbf16, #tpu.memory_space<vmem>>, vector<32x32xbf16>
    %cst = arith.constant dense<0.000000e+00> : vector<16x32xf32>
    %5 = tpu.matmul %1, %4, %cst {dimension_numbers = #tpu.dot_dimension_numbers<[1], [0], [0], [1], [0, 0, 1, 1], [], []>} : vector<16x32xbf16>, vector<32x32xbf16>, vector<16x32xf32> -> vector<16x32xf32>
    %c0_5 = arith.constant 0 : index
    %c0_6 = arith.constant 0 : index
    %6 = vector.load %arg4[%c0_5, %c0_6] : memref<32x32xbf16, #tpu.memory_space<vmem>>, vector<32x32xbf16>
    %cst_7 = arith.constant dense<0.000000e+00> : vector<2x32xf32>
    %7 = tpu.matmul %3, %6, %cst_7 {dimension_numbers = #tpu.dot_dimension_numbers<[1], [0], [0], [1], [0, 0, 1, 1], [], []>} : vector<2x32xbf16>, vector<32x32xbf16>, vector<2x32xf32> -> vector<2x32xf32>
    %c0_8 = arith.constant 0 : index
    %c0_9 = arith.constant 0 : index
    %8 = vector.load %arg6[%c0_8, %c0_9] : memref<1x32xf32, #tpu.memory_space<vmem>>, vector<1x32xf32>
    %9 = vector.broadcast %8 : vector<1x32xf32> to vector<2x32xf32>
    %10 = arith.addf %7, %9 : vector<2x32xf32>
    %11 = vector.shape_cast %5 : vector<16x32xf32> to vector<2x8x32xf32>
    %12 = vector.shape_cast %10 : vector<2x32xf32> to vector<2x1x32xf32>
    %13 = vector.broadcast %12 : vector<2x1x32xf32> to vector<2x8x32xf32>
    %14 = arith.addf %11, %13 : vector<2x8x32xf32>
    %cst_10 = arith.constant 0.000000e+00 : f32
    %15 = vector.broadcast %cst_10 : f32 to vector<2x8x32xf32>
    %16 = arith.maximumf %14, %15 : vector<2x8x32xf32>
    %c0_11 = arith.constant 0 : index
    %c0_12 = arith.constant 0 : index
    %17 = vector.load %arg7[%c0_11, %c0_12] : memref<1x32xf32, #tpu.memory_space<vmem>>, vector<1x32xf32>
    %18 = vector.shape_cast %17 : vector<1x32xf32> to vector<1x1x32xf32>
    %19 = vector.broadcast %18 : vector<1x1x32xf32> to vector<2x8x32xf32>
    %20 = arith.mulf %16, %19 : vector<2x8x32xf32>
    %cst_13 = arith.constant dense<0.000000e+00> : vector<2x8xf32>
    %21 = vector.multi_reduction <add>, %20, %cst_13 [2] : vector<2x8x32xf32> to vector<2x8xf32>
    %c0_14 = arith.constant 0 : index
    %c0_15 = arith.constant 0 : index
    %22 = vector.load %arg3[%c0_14, %c0_15] : memref<2x8xi32, #tpu.memory_space<vmem>>, vector<2x8xi32>
    %c0_i32 = arith.constant 0 : i32
    %23 = vector.broadcast %c0_i32 : i32 to vector<2x8xi32>
    %24 = arith.cmpi ne, %22, %23 : vector<2x8xi32>
    %cst_16 = arith.constant -9.99999995E+11 : f32
    %25 = vector.broadcast %cst_16 : f32 to vector<2x8xf32>
    %26 = arith.select %24, %25, %21 : vector<2x8xi1>, vector<2x8xf32>
    %27 = tpu.transpose %26, [1, 0] : vector<2x8xf32> -> vector<8x2xf32>
    %c0_17 = arith.constant 0 : index
    %c0_18 = arith.constant 0 : index
    %28 = vector.load %arg8[%c0_17, %c0_18] : memref<8x2xf32, #tpu.memory_space<vmem>>, vector<8x2xf32>
    tpu.vector_store %arg8[%c0_17, %c0_18], %27 {strides = array<i32>} : memref<8x2xf32, #tpu.memory_space<vmem>>, vector<8x2xf32>,
    return
  }
  func.func @transform_0(%arg0: i32) -> (i32, i32) {
    %c0_i32 = arith.constant 0 : i32
    %c0_i32_0 = arith.constant 0 : i32
    return %arg0, %c0_i32 : i32, i32
  }
  func.func @transform_1(%arg0: i32) -> (i32, i32) {
    %c0_i32 = arith.constant 0 : i32
    %c0_i32_0 = arith.constant 0 : i32
    return %arg0, %c0_i32 : i32, i32
  }
  func.func @transform_2(%arg0: i32) -> (i32, i32) {
    %c0_i32 = arith.constant 0 : i32
    %c0_i32_0 = arith.constant 0 : i32
    return %arg0, %c0_i32 : i32, i32
  }
  func.func @transform_3(%arg0: i32) -> (i32, i32) {
    %c0_i32 = arith.constant 0 : i32
    %c0_i32_0 = arith.constant 0 : i32
    %c0_i32_1 = arith.constant 0 : i32
    return %c0_i32, %c0_i32_0 : i32, i32
  }
  func.func @transform_4(%arg0: i32) -> (i32, i32) {
    %c0_i32 = arith.constant 0 : i32
    %c0_i32_0 = arith.constant 0 : i32
    %c0_i32_1 = arith.constant 0 : i32
    return %c0_i32, %c0_i32_0 : i32, i32
  }
  func.func @transform_5(%arg0: i32) -> (i32, i32) {
    %c0_i32 = arith.constant 0 : i32
    %c0_i32_0 = arith.constant 0 : i32
    %c0_i32_1 = arith.constant 0 : i32
    return %c0_i32, %c0_i32_0 : i32, i32
  }
  func.func @transform_6(%arg0: i32) -> (i32, i32) {
    %c0_i32 = arith.constant 0 : i32
    %c0_i32_0 = arith.constant 0 : i32
    %c0_i32_1 = arith.constant 0 : i32
    return %c0_i32, %c0_i32_0 : i32, i32
  }
  func.func @transform_7(%arg0: i32) -> (i32, i32) {
    %c0_i32 = arith.constant 0 : i32
    %c0_i32_0 = arith.constant 0 : i32
    return %c0_i32, %arg0 : i32, i32
  }
}

</mosaic_0001>

<llo_original>
// kernel: tpu_custom_call.1
$region0: #{tpu_custom_call.1}
  #allocation0 [shape = 'u32[]', space=smem, size = 0x4, offset = 0x4, fixed_abs, tag = 'smem constant byte address 0x4 - core index']
  #allocation1 [shape = 'u32[144,128]{1,0:T(1,128)}', space=vmem, size = 0x12000, scoped, tag = 'internal scratch']
  %s0 = inlined_call_operand.hbm [shape: f32[2,32], index: 0, kind: input, shape index: {}]
  %s1 = inlined_call_operand.hbm [shape: f32[16,32], index: 1, kind: input, shape index: {}]
  %s2 = inlined_call_operand.vmem [shape: s32[2,8], index: 2, kind: input, shape index: {}]
  %s3 = inlined_call_operand.hbm [shape: bf16[32,32], index: 3, kind: input, shape index: {}]
  %s4 = inlined_call_operand.hbm [shape: bf16[32,32], index: 4, kind: input, shape index: {}]
  %s5 = inlined_call_operand.vmem [shape: f32[1,32], index: 5, kind: input, shape index: {}]
  %s6 = inlined_call_operand.vmem [shape: f32[1,32], index: 6, kind: input, shape index: {}]
  %s7 = inlined_call_operand.vmem [shape: f32[8,2], index: 7, kind: output, shape index: {}]
  %s8 = sld [smem:[#allocation0]]
  $region54: #{tpu_custom_call.1} parent=0
    _
  %s10 = ssub.s32 1, %s8
  %s11 = scalar_select 0, %s10, %s8
  $region1: #{tpu_custom_call.1} parent=0
    #allocation2 [shape = 'u8[1024]{0}', space=vmem, size = 0x400, scoped, tag = 'input window, operand 0, single buffered']
    #allocation3 [shape = 's32[1]{0}', space=sflag, size = 0x4, scoped, tag = 'scoped memory for tpu_custom_call.1']
    #allocation4 [shape = 'u8[8192]{0}', space=vmem, size = 0x2000, scoped, tag = 'input window, operand 1, single buffered']
    #allocation5 [shape = 's32[1]{0}', space=sflag, size = 0x4, scoped, tag = 'scoped memory for tpu_custom_call.1']
    #allocation6 [shape = 'u8[8192]{0}', space=vmem, size = 0x2000, scoped, tag = 'input window, operand 3, single buffered']
    #allocation7 [shape = 'u8[8192]{0}', space=vmem, size = 0x2000, scoped, tag = 'input window, operand 4, single buffered']
    #allocation8 [shape = 's32[1]{0}', space=sflag, size = 0x4, scoped, tag = 'scoped memory for tpu_custom_call.1']
    %12 = vsyncpa [#allocation3], 0
    %13 = vsyncpa [#allocation5], 0
    %14 = vsyncpa [#allocation8], 0
    // Predicated region
    $region2: #{tpu_custom_call.1} parent=1 // pred_check
      _
    $region3: #{tpu_custom_call.1} parent=1 // pred_check_branch
      %16 = sbr.rel (0) target = $region5
    $region4: #{tpu_custom_call.1} parent=1 // pred_region
      %s18 = ssub.s32 32, 32
      %19 = vsyncadd [#allocation3], %s18
      %s21 = sshll.u32 [#allocation2], 4
      %s22 = int_to_ptr.vmem [resolvable:$true] %s21
      %24 = dma.hbm_to_vmem [thread:$0]  %s0, 32, %s22, [#allocation3]
    $region5: #{tpu_custom_call.1} parent=1 // pred_fallthru
      _
    // Predicated region
    $region6: #{tpu_custom_call.1} parent=1 // pred_check
      _
    $region7: #{tpu_custom_call.1} parent=1 // pred_check_branch
      %26 = sbr.rel (0) target = $region9
    $region8: #{tpu_custom_call.1} parent=1 // pred_region
      %s28 = ssub.s32 256, 256
      %29 = vsyncadd [#allocation5], %s28
      %s30 = sshll.u32 [#allocation4], 4
      %s31 = int_to_ptr.vmem [resolvable:$true] %s30
      %36 = dma.hbm_to_vmem [thread:$0]  %s1, 256, %s31, [#allocation5], 128, 128, 8
    $region9: #{tpu_custom_call.1} parent=1 // pred_fallthru
      _
    // Predicated region
    $region10: #{tpu_custom_call.1} parent=1 // pred_check
      _
    $region11: #{tpu_custom_call.1} parent=1 // pred_check_branch
      %38 = sbr.rel (0) target = $region13
    $region12: #{tpu_custom_call.1} parent=1 // pred_region
      _
    $region13: #{tpu_custom_call.1} parent=1 // pred_fallthru
      _
    // Predicated region
    $region14: #{tpu_custom_call.1} parent=1 // pred_check
      _
    $region15: #{tpu_custom_call.1} parent=1 // pred_check_branch
      %40 = sbr.rel (0) target = $region17
    $region16: #{tpu_custom_call.1} parent=1 // pred_region
      %s42 = ssub.s32 256, 256
      %43 = vsyncadd [#allocation5], %s42
      %s44 = sshll.u32 [#allocation6], 4
      %s45 = int_to_ptr.vmem [resolvable:$true] %s44
      %50 = dma.hbm_to_vmem [thread:$0]  %s3, 256, %s45, [#allocation5], 64, 64, 4
    $region17: #{tpu_custom_call.1} parent=1 // pred_fallthru
      _
    // Predicated region
    $region18: #{tpu_custom_call.1} parent=1 // pred_check
      _
    $region19: #{tpu_custom_call.1} parent=1 // pred_check_branch
      %52 = sbr.rel (0) target = $region21
    $region20: #{tpu_custom_call.1} parent=1 // pred_region
      %s54 = ssub.s32 256, 256
      %55 = vsyncadd [#allocation8], %s54
      %s56 = sshll.u32 [#allocation7], 4
      %s57 = int_to_ptr.vmem [resolvable:$true] %s56
      %62 = dma.hbm_to_vmem [thread:$0]  %s4, 256, %s57, [#allocation8], 64, 64, 4
    $region21: #{tpu_custom_call.1} parent=1 // pred_fallthru
      _
    // Predicated region
    $region22: #{tpu_custom_call.1} parent=1 // pred_check
      _
    $region23: #{tpu_custom_call.1} parent=1 // pred_check_branch
      %64 = sbr.rel (0) target = $region25
    $region24: #{tpu_custom_call.1} parent=1 // pred_region
      _
    $region25: #{tpu_custom_call.1} parent=1 // pred_fallthru
      _
    // Predicated region
    $region26: #{tpu_custom_call.1} parent=1 // pred_check
      _
    $region27: #{tpu_custom_call.1} parent=1 // pred_check_branch
      %66 = sbr.rel (0) target = $region29
    $region28: #{tpu_custom_call.1} parent=1 // pred_region
      _
    $region29: #{tpu_custom_call.1} parent=1 // pred_fallthru
      _
    // Predicated region
    $region30: #{tpu_custom_call.1} parent=1 // pred_check
      _
    $region31: #{tpu_custom_call.1} parent=1 // pred_check_branch
      %68 = sbr.rel (0) target = $region33
    $region32: #{tpu_custom_call.1} parent=1 // pred_region
      %69 = dma.done [#allocation3], 32
    $region33: #{tpu_custom_call.1} parent=1 // pred_fallthru
      _
    // Predicated region
    $region34: #{tpu_custom_call.1} parent=1 // pred_check
      _
    $region35: #{tpu_custom_call.1} parent=1 // pred_check_branch
      %71 = sbr.rel (0) target = $region37
    $region36: #{tpu_custom_call.1} parent=1 // pred_region
      %72 = dma.done [#allocation5], 256
    $region37: #{tpu_custom_call.1} parent=1 // pred_fallthru
      _
    // Predicated region
    $region38: #{tpu_custom_call.1} parent=1 // pred_check
      _
    $region39: #{tpu_custom_call.1} parent=1 // pred_check_branch
      %74 = sbr.rel (0) target = $region41
    $region40: #{tpu_custom_call.1} parent=1 // pred_region
      %75 = dma.done [#allocation5], 256
    $region41: #{tpu_custom_call.1} parent=1 // pred_fallthru
      _
    // Predicated region
    $region42: #{tpu_custom_call.1} parent=1 // pred_check
      _
    $region43: #{tpu_custom_call.1} parent=1 // pred_check_branch
      %77 = sbr.rel (0) target = $region45
    $region44: #{tpu_custom_call.1} parent=1 // pred_region
      %78 = dma.done [#allocation8], 256
    $region45: #{tpu_custom_call.1} parent=1 // pred_fallthru
      _
    %v80 = vld [vmem:[#allocation4] sm:$0xff]
    %v81 = vld [vmem:[#allocation4 + $0x8] sm:$0xff]
    %v82 = vpack.c.bf16 %v81, %v80
    %v83 = vld [vmem:[#allocation2] sm:$0x3]
    %v84 = vpack.c.bf16 %v83, %v83
    %v85 = vld [vmem:[#allocation7] sm:$0xf]
    %v86 = vld [vmem:[#allocation7 + $0x4] sm:$0xf]
    %v87 = vld [vmem:[#allocation7 + $0x8] sm:$0xf]
    %v88 = vld [vmem:[#allocation7 + $0xc] sm:$0xf]
    %v93 = vunpack.c.l.b16 %v85
    %v94 = vunpack.c.l.b16 %v86
    %v95 = vunpack.c.l.b16 %v87
    %v96 = vunpack.c.l.b16 %v88
    %v97 = vpack.c.b16 %v94, %v93
    %v98 = vpack.c.b16 %v96, %v95
    %vm101 = vcmask 261120
    %v103 = vsel %vm101, %v82, 0
    %105 = vmatprep.subr.bf16.mxu0 0
    %106 = vmatpush1.bf16.msra.mxu0 0
    %107 = vmatprep.subr.bf16.mxu0 0
    %108 = vmatpush1.bf16.msra.mxu0 0
    %109 = vmatprep.subr.bf16.mxu0 0
    %110 = vmatpush1.bf16.msra.mxu0 0
    %111 = vmatprep.subr.bf16.mxu0 0
    %112 = vmatpush1.bf16.msra.mxu0 0
    %113 = vmatprep.subr.bf16.mxu0 0
    %114 = vmatpush1.bf16.msra.mxu0 0
    %115 = vmatprep.subr.bf16.mxu0 0
    %116 = vmatpush1.bf16.msra.mxu0 0
    %117 = vmatprep.subr.bf16.mxu0 0
    %118 = vmatpush1.bf16.msra.mxu0 %v98
    %119 = vmatprep.subr.bf16.mxu0 0
    %120 = vmatpush1.bf16.msra.mxu0 %v97
    %121 = vmatprep.subr.bf16.mxu0 0
    %122 = vmatpush2.bf16.msra.mxu0 0
    %123 = vmatprep.subr.bf16.mxu0 0
    %124 = vmatpush2.bf16.msra.mxu0 0
    %125 = vmatprep.subr.bf16.mxu0 0
    %126 = vmatpush2.bf16.msra.mxu0 0
    %127 = vmatprep.subr.bf16.mxu0 0
    %128 = vmatpush2.bf16.msra.mxu0 0
    %129 = vmatprep.subr.bf16.mxu0 0
    %130 = vmatpush2.bf16.msra.mxu0 0
    %131 = vmatprep.subr.bf16.mxu0 0
    %132 = vmatpush2.bf16.msra.mxu0 0
    %133 = vmatprep.subr.bf16.mxu0 0
    %134 = vmatpush2.bf16.msra.mxu0 0
    %135 = vmatprep.subr.bf16.mxu0 0
    %136 = vmatpush2.bf16.msra.mxu0 0
    %137 = vmatprep.mubr.bf16.mxu0 0
    %138 = vmatmul.mubr.bf16.gmra.mxu0 %v103
    %v139 = vpop.f32.mrf.mxu0
    %v140 = vadd.f32 0.0, %v139
    %v141 = vpop.f32.mrf.mxu0
    %v142 = vpop.f32.mrf.mxu0
    %v143 = vadd.f32 0.0, %v142
    %v144 = vpop.f32.mrf.mxu0
    %145 = vdwg.mxu0
    %v146 = vld [vmem:[#allocation6] sm:$0xf]
    %v147 = vld [vmem:[#allocation6 + $0x4] sm:$0xf]
    %v148 = vld [vmem:[#allocation6 + $0x8] sm:$0xf]
    %v149 = vld [vmem:[#allocation6 + $0xc] sm:$0xf]
    %v150 = vld [vmem:[%s5] sm:$0x1]
    %v152 = vlaneseq
    %v153 = vshrl.u32 %v152, 7
    %v154 = vsub.s32 0, %v153
    %v155 = vrot.slane %v150, %v154
    %v161 = vunpack.c.l.b16 %v146
    %v162 = vunpack.c.l.b16 %v147
    %v163 = vunpack.c.l.b16 %v148
    %v164 = vunpack.c.l.b16 %v149
    %v165 = vpack.c.b16 %v162, %v161
    %v166 = vpack.c.b16 %v164, %v163
    %v170 = vsel %vm101, %v84, 0
    %172 = vmatprep.subr.bf16.mxu0 0
    %173 = vmatpush1.bf16.msra.mxu0 0
    %174 = vmatprep.subr.bf16.mxu0 0
    %175 = vmatpush1.bf16.msra.mxu0 0
    %176 = vmatprep.subr.bf16.mxu0 0
    %177 = vmatpush1.bf16.msra.mxu0 0
    %178 = vmatprep.subr.bf16.mxu0 0
    %179 = vmatpush1.bf16.msra.mxu0 0
    %180 = vmatprep.subr.bf16.mxu0 0
    %181 = vmatpush1.bf16.msra.mxu0 0
    %182 = vmatprep.subr.bf16.mxu0 0
    %183 = vmatpush1.bf16.msra.mxu0 0
    %184 = vmatprep.subr.bf16.mxu0 0
    %185 = vmatpush1.bf16.msra.mxu0 %v166
    %186 = vmatprep.subr.bf16.mxu0 0
    %187 = vmatpush1.bf16.msra.mxu0 %v165
    %188 = vmatprep.subr.bf16.mxu0 0
    %189 = vmatpush2.bf16.msra.mxu0 0
    %190 = vmatprep.subr.bf16.mxu0 0
    %191 = vmatpush2.bf16.msra.mxu0 0
    %192 = vmatprep.subr.bf16.mxu0 0
    %193 = vmatpush2.bf16.msra.mxu0 0
    %194 = vmatprep.subr.bf16.mxu0 0
    %195 = vmatpush2.bf16.msra.mxu0 0
    %196 = vmatprep.subr.bf16.mxu0 0
    %197 = vmatpush2.bf16.msra.mxu0 0
    %198 = vmatprep.subr.bf16.mxu0 0
    %199 = vmatpush2.bf16.msra.mxu0 0
    %200 = vmatprep.subr.bf16.mxu0 0
    %201 = vmatpush2.bf16.msra.mxu0 0
    %202 = vmatprep.subr.bf16.mxu0 0
    %203 = vmatpush2.bf16.msra.mxu0 0
    %204 = vmatprep.mubr.bf16.mxu0 0
    %205 = vmatmul.mubr.bf16.gmra.mxu0 %v170
    %v206 = vpop.f32.mrf.mxu0
    %v207 = vadd.f32 %v155, %v206
    %v208 = vpop.f32.mrf.mxu0
    %v209 = vpop.f32.mrf.mxu0
    %v210 = vpop.f32.mrf.mxu0
    %211 = vdwg.mxu0
    %v214 = vunpack.c.l.s4 1966171168
    %v215 = vunpack.c.0.s8 %v214
    %v216 = vlaneseq
    %v217 = vshrl.u32 %v216, 7
    %v218 = vsub.s32 %v215, %v217
    %v219 = vrot.slane %v207, %v218
    %v220 = vcombine.high %v219, %v219
    %v222 = vunpack.c.l.s4 1966171168
    %v223 = vunpack.c.0.s8 %v222
    %v224 = vlaneseq
    %v225 = vshrl.u32 %v224, 7
    %v226 = vsub.s32 %v223, %v225
    %v227 = vrot.slane %v219, %v226
    %v229 = vunpack.c.l.s4 1966171168
    %v230 = vunpack.c.0.s8 %v229
    %v231 = vlaneseq
    %v232 = vshrl.u32 %v231, 7
    %v233 = vsub.s32 %v230, %v232
    %v234 = vrot.slane %v220, %v233
    %v235 = vlaneseq
    %v236 = vshrl.u32 %v235, 7
    %v237 = vsub.s32 0, %v236
    %v238 = vrot.slane %v227, %v237
    %v239 = vlaneseq
    %v240 = vshrl.u32 %v239, 7
    %v241 = vsub.s32 0, %v240
    %v242 = vrot.slane %v234, %v241
    %v245 = vadd.f32 %v140, %v238
    %v246 = vadd.f32 %v143, %v242
    %v247 = vmax.f32 %v245, 0.0
    %v248 = vmax.f32 %v246, 0.0
    %v249 = vld [vmem:[%s6] sm:$0x1]
    %v251 = vlaneseq
    %v252 = vshrl.u32 %v251, 7
    %v253 = vsub.s32 0, %v252
    %v254 = vrot.slane %v249, %v253
    %v256 = vmul.f32 %v247, %v254
    %v257 = vmul.f32 %v248, %v254
    %v258 = vsel %vm101, %v256, 0.0
    %259 = vadd.xlane.f32.xlu0 %v258
    %v260 = vpop.xlane.xlu0 %259
    %v261 = vsel %vm101, %v257, 0.0
    %262 = vadd.xlane.f32.xlu0 %v261
    %v263 = vpop.xlane.xlu0 %262
    %v264 = vld [vmem:[%s2] sm:$0x3]
    %vm265 = vcmp.ne.s32.totalorder %v264, 0
    %v268 = vlaneseq
    %v269 = vand.u32 %v268, 127
    %v270 = vlaneseq
    %v271 = vshrl.u32 %v270, 7
    %v272 = vsub.s32 %v269, %v271
    %v273 = vrot.slane %v260, %v272
    %v274 = vlaneseq
    %v275 = vshrl.u32 %v274, 7
    %v276 = vsub.s32 %v269, %v275
    %v277 = vrot.slane %v263, %v276
    %vm278 = vcmask 1041409
    %v279 = vsel %vm278, %v277, %v273
    %v281 = vsel %vm265, -1e+12, %v279
    %282 = vxpose.xlu0.b32.start [1/16] %v281, 128
    %283 = vxpose.xlu0.b32.cont [2/16] 0.0, 128
    %284 = vxpose.xlu0.b32.cont [3/16] 0.0, 128
    %285 = vxpose.xlu0.b32.cont [4/16] 0.0, 128
    %286 = vxpose.xlu0.b32.cont [5/16] 0.0, 128
    %287 = vxpose.xlu0.b32.cont [6/16] 0.0, 128
    %288 = vxpose.xlu0.b32.cont [7/16] 0.0, 128
    %289 = vxpose.xlu0.b32.cont [8/16] 0.0, 128
    %290 = vxpose.xlu0.b32.cont [9/16] 0.0, 128
    %291 = vxpose.xlu0.b32.cont [10/16] 0.0, 128
    %292 = vxpose.xlu0.b32.cont [11/16] 0.0, 128
    %293 = vxpose.xlu0.b32.cont [12/16] 0.0, 128
    %294 = vxpose.xlu0.b32.cont [13/16] 0.0, 128
    %295 = vxpose.xlu0.b32.cont [14/16] 0.0, 128
    %296 = vxpose.xlu0.b32.cont [15/16] 0.0, 128
    %297 = vxpose.xlu0.b32.end [16/16] 0.0, 128
    %v298 = vpop.trf.xlu0
    %v299 = vpop.trf.xlu0
    %v300 = vpop.trf.xlu0
    %v301 = vpop.trf.xlu0
    %v302 = vpop.trf.xlu0
    %v303 = vpop.trf.xlu0
    %v304 = vpop.trf.xlu0
    %v305 = vpop.trf.xlu0
    %v306 = vpop.trf.xlu0
    %v307 = vpop.trf.xlu0
    %v308 = vpop.trf.xlu0
    %v309 = vpop.trf.xlu0
    %v310 = vpop.trf.xlu0
    %v311 = vpop.trf.xlu0
    %v312 = vpop.trf.xlu0
    %v313 = vpop.trf.xlu0
    %vm314 = vcmask 15360
    %315 = vst.msk [vmem:[%s7] sm:$0xff] %vm314, %v298
    // Predicated region
    $region46: #{tpu_custom_call.1} parent=1 // pred_check
      _
    $region47: #{tpu_custom_call.1} parent=1 // pred_check_branch
      %317 = sbr.rel (0) target = $region49
    $region48: #{tpu_custom_call.1} parent=1 // pred_region
      _
    $region49: #{tpu_custom_call.1} parent=1 // pred_fallthru
      _
    // Predicated region
    $region50: #{tpu_custom_call.1} parent=1 // pred_check
      _
    $region51: #{tpu_custom_call.1} parent=1 // pred_check_branch
      %319 = sbr.rel (0) target = $region53
    $region52: #{tpu_custom_call.1} parent=1 // pred_region
      _
    $region53: #{tpu_custom_call.1} parent=1 // pred_fallthru
      _
    %320 = vsyncpa [#allocation3], 1
    %321 = vsyncpa [#allocation5], 1
    %322 = vsyncpa [#allocation8], 1

</llo_original>
